<compile_context>
chip_gen: v6e
topology: v6e:2x2x1
jax: 0.10.0
libtpu: 0.0.40
codegen_flags: <defaults>
</compile_context>

<pallas_src>
import functools

import numpy as np
import jax
import jax.numpy as jnp
from jax.experimental import pallas as pl
from jax.experimental.pallas import tpu as pltpu

# ---------------- problem sizes (small, consistent with the module) ----------
B = 2        # batch of graphs
N = 8        # nodes per graph
IN_M = 64    # message size            (params['in_m'])
H = 32       # node hidden state size  (params['out'])

MAX_TILE_ROWS = 1024   # row-tile cap; safe for v5e 16MiB scoped / v7x 64MiB VMEM


def gru_fused_kernel(x_ref, w_ref, b_ref, out_ref, *, in_m, hidden):
    """One GRU-cell step for a (TM, in_m+H) row tile.

    x_ref : (TM, in_m + H)   = [m | h]       (row tile, pipelined)
    w_ref : (in_m + H, 4H)   zero-padded fused weight (resident)
    b_ref : (1, 4H)          combined bias row        (resident)
    out   : (TM, H)          h'
    """
    x = x_ref[...]
    # Single fused MXU pass: K = in_m + H, N = 4H.
    g = jnp.dot(x, w_ref[...], preferred_element_type=jnp.float32) + b_ref[...]

    r = jax.nn.sigmoid(g[:, 0 * hidden:1 * hidden])
    z = jax.nn.sigmoid(g[:, 1 * hidden:2 * hidden])
    n = jnp.tanh(g[:, 2 * hidden:3 * hidden] + r * g[:, 3 * hidden:4 * hidden])

    h = x[:, in_m:in_m + hidden].astype(jnp.float32)
    out_ref[...] = ((1.0 - z) * n + z * h).astype(out_ref.dtype)


def make_gru_params(key, in_m, hidden, scale=0.1):
    """Raw GRU parameters, pre-transposed: (in, 3H) / (H, 3H) + two biases."""
    k1, k2, k3, k4 = jax.random.split(key, 4)
    w_ih_t = scale * jax.random.normal(k1, (in_m, 3 * hidden), jnp.float32)
    w_hh_t = scale * jax.random.normal(k2, (hidden, 3 * hidden), jnp.float32)
    b_ih = scale * jax.random.normal(k3, (3 * hidden,), jnp.float32)
    b_hh = scale * jax.random.normal(k4, (3 * hidden,), jnp.float32)
    return w_ih_t, w_hh_t, b_ih, b_hh


def fuse_gru_params(w_ih_t, w_hh_t, b_ih, b_hh):
    """Build the zero-padded (in_m+H, 4H) fused weight + (1, 4H) fused bias.

    Column layout: [ r | z | i_n | h_n ]  (each block is H wide).
    Row layout   : first in_m rows take the message, last H rows take h.
    h_n gets its own column block (NOT summed with i_n) so that
    n = tanh(i_n + r * h_n) keeps exact torch GRU semantics.
    """
    in_m, three_h = w_ih_t.shape
    hidden = three_h // 3
    w_fused = jnp.zeros((in_m + hidden, 4 * hidden), jnp.float32)
    w_fused = w_fused.at[:in_m, :3 * hidden].set(w_ih_t)            # W_ir|W_iz|W_in
    w_fused = w_fused.at[in_m:, :2 * hidden].set(w_hh_t[:, :2 * hidden])  # W_hr|W_hz
    w_fused = w_fused.at[in_m:, 3 * hidden:].set(w_hh_t[:, 2 * hidden:])  # W_hn
    b_fused = jnp.concatenate([
        b_ih[:2 * hidden] + b_hh[:2 * hidden],   # r, z: input+hidden biases combined
        b_ih[2 * hidden:],                       # b_in
        b_hh[2 * hidden:],                       # b_hn
    ]).reshape(1, 4 * hidden)
    return w_fused, b_fused


def mpnn_update(h_v, m_v, w_fused, b_fused, *, max_tile_rows=MAX_TILE_ROWS):
    """Pallas-backed UpdateFunction('mpnn').forward(h_v, m_v)."""
    b, n_nodes, hidden = h_v.shape
    in_m = m_v.shape[-1]
    bn = b * n_nodes
    k_dim = in_m + hidden

    # Flatten batch*nodes and concat [m | h] along lanes in the wrapper.
    x = jnp.concatenate(
        [m_v.reshape(bn, in_m), h_v.reshape(bn, hidden)], axis=-1)

    # Row tile: whole problem in one step when small; bounded row tiles (with
    # DMA/compute pipelining) when B*N is large.
    tm = bn if bn <= max_tile_rows else max_tile_rows
    bn_pad = ((bn + tm - 1) // tm) * tm
    if bn_pad != bn:
        x = jnp.pad(x, ((0, bn_pad - bn), (0, 0)))
    grid = (bn_pad // tm,)

    flops = 2 * bn_pad * k_dim * 4 * hidden + 12 * bn_pad * hidden
    transcendentals = 5 * bn_pad * hidden   # sigmoid ~ exp + reciprocal
    bytes_accessed = 4 * (bn_pad * k_dim + k_dim * 4 * hidden
                          + 4 * hidden + bn_pad * hidden)
    cost = pl.CostEstimate(flops=int(flops),
                           transcendentals=int(transcendentals),
                           bytes_accessed=int(bytes_accessed))

    kernel = functools.partial(gru_fused_kernel, in_m=in_m, hidden=hidden)

    out = pl.pallas_call(
        kernel,
        out_shape=jax.ShapeDtypeStruct((bn_pad, hidden), jnp.float32),
        grid_spec=pltpu.PrefetchScalarGridSpec(
            num_scalar_prefetch=0,
            grid=grid,
            in_specs=[
                pl.BlockSpec((tm, k_dim), lambda i: (i, 0)),         # [m|h] rows
                pl.BlockSpec((k_dim, 4 * hidden), lambda i: (0, 0)),  # resident W
                pl.BlockSpec((1, 4 * hidden), lambda i: (0, 0)),      # resident b
            ],
            out_specs=pl.BlockSpec((tm, hidden), lambda i: (i, 0)),
        ),
        compiler_params=pltpu.CompilerParams(
            dimension_semantics=("parallel",)),   # shards rows across TCs on v7x
        cost_estimate=cost,
    )(x, w_fused, b_fused)

    return out[:bn].reshape(b, n_nodes, hidden)


def mpnn_update_ref(h_v, m_v, w_ih_t, w_hh_t, b_ih, b_hh):
    """Pure-JAX reference mirroring torch.nn.GRU single-step semantics."""
    b, n_nodes, hidden = h_v.shape
    m = m_v.reshape(-1, m_v.shape[-1])
    h = h_v.reshape(-1, hidden)
    gi = m @ w_ih_t + b_ih
    gh = h @ w_hh_t + b_hh
    i_r, i_z, i_n = jnp.split(gi, 3, axis=-1)
    h_r, h_z, h_n = jnp.split(gh, 3, axis=-1)
    r = jax.nn.sigmoid(i_r + h_r)
    z = jax.nn.sigmoid(i_z + h_z)
    n = jnp.tanh(i_n + r * h_n)
    h_new = (1.0 - z) * n + z * h
    return h_new.reshape(b, n_nodes, hidden)


if __name__ == "__main__":
    key = jax.random.PRNGKey(0)
    key, kh, km, kp = jax.random.split(key, 4)

    # h_v: current node hidden states; m_v: aggregated incoming messages.
    h_v = jax.random.normal(kh, (B, N, H), jnp.float32)
    m_v = jax.random.normal(km, (B, N, IN_M), jnp.float32)

    # init_mpnn: nn.GRU(in_m, out) parameters (pre-transposed + fused/padded).
    w_ih_t, w_hh_t, b_ih, b_hh = make_gru_params(kp, IN_M, H)
    w_fused, b_fused = fuse_gru_params(w_ih_t, w_hh_t, b_ih, b_hh)

    out = mpnn_update(h_v, m_v, w_fused, b_fused)
    out = jax.block_until_ready(out)

    ref = mpnn_update_ref(h_v, m_v, w_ih_t, w_hh_t, b_ih, b_hh)
    np.testing.assert_allclose(np.asarray(out), np.asarray(ref),
                               rtol=1e-5, atol=1e-5)
    assert out.shape == (B, N, H)
    print("KERNEL_OK")
</pallas_src>

<mosaic_0001>
module attributes {stable_mosaic.version = 11 : i64} {
  func.func @gru_fused_kernel(%arg0: i32, %arg1: memref<16x96xf32, #tpu.memory_space<vmem>>, %arg2: memref<96x128xf32, #tpu.memory_space<vmem>>, %arg3: memref<1x128xf32, #tpu.memory_space<vmem>>, %arg4: memref<16x32xf32, #tpu.memory_space<vmem>>) attributes {dimension_semantics = [#tpu.dimension_semantics<parallel>], iteration_bounds = array<i64: 1>, scalar_prefetch = 0 : i64, scratch_operands = 0 : i64, tpu.core_type = #tpu.core_type<tc>, window_params = [{transform_indices = @transform_0, window_bounds = array<i64: 16, 96>}, {pipeline_mode = #tpu.pipeline_mode<synchronous>, transform_indices = @transform_1, window_bounds = array<i64: 96, 128>}, {pipeline_mode = #tpu.pipeline_mode<synchronous>, transform_indices = @transform_2, window_bounds = array<i64: 1, 128>}, {transform_indices = @transform_3, window_bounds = array<i64: 16, 32>}]} {
    %c0 = arith.constant 0 : index
    %c0_0 = arith.constant 0 : index
    %0 = vector.load %arg1[%c0, %c0_0] : memref<16x96xf32, #tpu.memory_space<vmem>>, vector<16x96xf32>
    %c0_1 = arith.constant 0 : index
    %c0_2 = arith.constant 0 : index
    %1 = vector.load %arg2[%c0_1, %c0_2] : memref<96x128xf32, #tpu.memory_space<vmem>>, vector<96x128xf32>
    %cst = arith.constant dense<0.000000e+00> : vector<16x128xf32>
    %2 = tpu.matmul %0, %1, %cst {dimension_numbers = #tpu.dot_dimension_numbers<[1], [0], [0], [1], [0, 0, 1, 1], [], []>} : vector<16x96xf32>, vector<96x128xf32>, vector<16x128xf32> -> vector<16x128xf32>
    %c0_3 = arith.constant 0 : index
    %c0_4 = arith.constant 0 : index
    %3 = vector.load %arg3[%c0_3, %c0_4] : memref<1x128xf32, #tpu.memory_space<vmem>>, vector<1x128xf32>
    %4 = vector.broadcast %3 : vector<1x128xf32> to vector<16x128xf32>
    %5 = arith.addf %2, %4 : vector<16x128xf32>
    %6 = vector.extract_strided_slice %5 {offsets = [0, 0], sizes = [16, 32], strides = [1, 1]} : vector<16x128xf32> to vector<16x32xf32>
    %7 = arith.negf %6 : vector<16x32xf32>
    %8 = math.exp %7 : vector<16x32xf32>
    %cst_5 = arith.constant 1.000000e+00 : f32
    %9 = vector.broadcast %cst_5 : f32 to vector<16x32xf32>
    %10 = arith.addf %9, %8 : vector<16x32xf32>
    %11 = arith.divf %9, %10 : vector<16x32xf32>
    %12 = vector.extract_strided_slice %5 {offsets = [0, 32], sizes = [16, 32], strides = [1, 1]} : vector<16x128xf32> to vector<16x32xf32>
    %13 = arith.negf %12 : vector<16x32xf32>
    %14 = math.exp %13 : vector<16x32xf32>
    %cst_6 = arith.constant 1.000000e+00 : f32
    %15 = vector.broadcast %cst_6 : f32 to vector<16x32xf32>
    %16 = arith.addf %15, %14 : vector<16x32xf32>
    %17 = arith.divf %15, %16 : vector<16x32xf32>
    %18 = vector.extract_strided_slice %5 {offsets = [0, 64], sizes = [16, 32], strides = [1, 1]} : vector<16x128xf32> to vector<16x32xf32>
    %19 = vector.extract_strided_slice %5 {offsets = [0, 96], sizes = [16, 32], strides = [1, 1]} : vector<16x128xf32> to vector<16x32xf32>
    %20 = arith.mulf %11, %19 : vector<16x32xf32>
    %21 = arith.addf %18, %20 : vector<16x32xf32>
    %22 = math.tanh %21 : vector<16x32xf32>
    %23 = vector.extract_strided_slice %0 {offsets = [0, 64], sizes = [16, 32], strides = [1, 1]} : vector<16x96xf32> to vector<16x32xf32>
    %cst_7 = arith.constant 1.000000e+00 : f32
    %24 = vector.broadcast %cst_7 : f32 to vector<16x32xf32>
    %25 = arith.subf %24, %17 : vector<16x32xf32>
    %26 = arith.mulf %25, %22 : vector<16x32xf32>
    %27 = arith.mulf %17, %23 : vector<16x32xf32>
    %28 = arith.addf %26, %27 : vector<16x32xf32>
    %c0_8 = arith.constant 0 : index
    %c0_9 = arith.constant 0 : index
    %29 = vector.load %arg4[%c0_8, %c0_9] : memref<16x32xf32, #tpu.memory_space<vmem>>, vector<16x32xf32>
    tpu.vector_store %arg4[%c0_8, %c0_9], %28 {strides = array<i32>} : memref<16x32xf32, #tpu.memory_space<vmem>>, vector<16x32xf32>,
    return
  }
  func.func @transform_0(%arg0: i32) -> (i32, i32) {
    %c0_i32 = arith.constant 0 : i32
    %c0_i32_0 = arith.constant 0 : i32
    return %arg0, %c0_i32 : i32, i32
  }
  func.func @transform_1(%arg0: i32) -> (i32, i32) {
    %c0_i32 = arith.constant 0 : i32
    %c0_i32_0 = arith.constant 0 : i32
    %c0_i32_1 = arith.constant 0 : i32
    return %c0_i32, %c0_i32_0 : i32, i32
  }
  func.func @transform_2(%arg0: i32) -> (i32, i32) {
    %c0_i32 = arith.constant 0 : i32
    %c0_i32_0 = arith.constant 0 : i32
    %c0_i32_1 = arith.constant 0 : i32
    return %c0_i32, %c0_i32_0 : i32, i32
  }
  func.func @transform_3(%arg0: i32) -> (i32, i32) {
    %c0_i32 = arith.constant 0 : i32
    %c0_i32_0 = arith.constant 0 : i32
    return %arg0, %c0_i32 : i32, i32
  }
}

</mosaic_0001>

<llo_original>
// kernel: tpu_custom_call.1
$region0: #{tpu_custom_call.1}
  #allocation0 [shape = 'u32[]', space=smem, size = 0x4, offset = 0x4, fixed_abs, tag = 'smem constant byte address 0x4 - core index']
  #allocation1 [shape = 'u32[144,128]{1,0:T(1,128)}', space=vmem, size = 0x12000, scoped, tag = 'internal scratch']
  %s0 = inlined_call_operand.hbm [shape: f32[16,96], index: 0, kind: input, shape index: {}]
  %s1 = inlined_call_operand.hbm [shape: f32[96,128], index: 1, kind: input, shape index: {}]
  %s2 = inlined_call_operand.vmem [shape: f32[1,128], index: 2, kind: input, shape index: {}]
  %s3 = inlined_call_operand.hbm [shape: f32[16,32], index: 3, kind: output, shape index: {}]
  %s4 = sld [smem:[#allocation0]]
  $region30: #{tpu_custom_call.1} parent=0
    _
  %s6 = ssub.s32 1, %s4
  %s7 = scalar_select 0, %s6, %s4
  $region1: #{tpu_custom_call.1} parent=0
    #allocation2 [shape = 'u8[8192]{0}', space=vmem, size = 0x2000, scoped, tag = 'input window, operand 0, single buffered']
    #allocation3 [shape = 's32[1]{0}', space=sflag, size = 0x4, scoped, tag = 'scoped memory for tpu_custom_call.1']
    #allocation4 [shape = 's32[1]{0}', space=sflag, size = 0x4, scoped, tag = 'scoped memory for tpu_custom_call.1']
    #allocation5 [shape = 'u8[49152]{0}', space=vmem, size = 0xc000, scoped, tag = 'input window, operand 1, single buffered']
    #allocation6 [shape = 's32[1]{0}', space=sflag, size = 0x4, scoped, tag = 'scoped memory for tpu_custom_call.1']
    #allocation7 [shape = 'u8[8192]{0}', space=vmem, size = 0x2000, scoped, tag = 'output window, operand 0, single buffered']
    %8 = vsyncpa [#allocation3], 0
    %9 = vsyncpa [#allocation6], 0
    %10 = vsyncpa [#allocation4], 0
    // Predicated region
    $region2: #{tpu_custom_call.1} parent=1 // pred_check
      _
    $region3: #{tpu_custom_call.1} parent=1 // pred_check_branch
      %12 = sbr.rel (0) target = $region5
    $region4: #{tpu_custom_call.1} parent=1 // pred_region
      %s14 = ssub.s32 256, 256
      %15 = vsyncadd [#allocation3], %s14
      %s16 = sshll.u32 [#allocation2], 4
      %s17 = int_to_ptr.vmem [resolvable:$true] %s16
      %22 = dma.hbm_to_vmem [thread:$0]  %s0, 256, %s17, [#allocation3], 128, 128, 8
    $region5: #{tpu_custom_call.1} parent=1 // pred_fallthru
      _
    // Predicated region
    $region6: #{tpu_custom_call.1} parent=1 // pred_check
      _
    $region7: #{tpu_custom_call.1} parent=1 // pred_check_branch
      %24 = sbr.rel (0) target = $region9
    $region8: #{tpu_custom_call.1} parent=1 // pred_region
      %s26 = ssub.s32 1536, 1536
      %27 = vsyncadd [#allocation6], %s26
      %s28 = sshll.u32 [#allocation5], 4
      %s29 = int_to_ptr.vmem [resolvable:$true] %s28
      %34 = dma.hbm_to_vmem [thread:$0]  %s1, 1536, %s29, [#allocation6], 128, 128, 8
    $region9: #{tpu_custom_call.1} parent=1 // pred_fallthru
      _
    // Predicated region
    $region10: #{tpu_custom_call.1} parent=1 // pred_check
      _
    $region11: #{tpu_custom_call.1} parent=1 // pred_check_branch
      %36 = sbr.rel (0) target = $region13
    $region12: #{tpu_custom_call.1} parent=1 // pred_region
      _
    $region13: #{tpu_custom_call.1} parent=1 // pred_fallthru
      _
    // Predicated region
    $region14: #{tpu_custom_call.1} parent=1 // pred_check
      _
    $region15: #{tpu_custom_call.1} parent=1 // pred_check_branch
      %38 = sbr.rel (0) target = $region17
    $region16: #{tpu_custom_call.1} parent=1 // pred_region
      %39 = dma.done [#allocation3], 256
    $region17: #{tpu_custom_call.1} parent=1 // pred_fallthru
      _
    // Predicated region
    $region18: #{tpu_custom_call.1} parent=1 // pred_check
      _
    $region19: #{tpu_custom_call.1} parent=1 // pred_check_branch
      %41 = sbr.rel (0) target = $region21
    $region20: #{tpu_custom_call.1} parent=1 // pred_region
      %42 = dma.done [#allocation6], 1536
    $region21: #{tpu_custom_call.1} parent=1 // pred_fallthru
      _
    %v43 = vld [vmem:[#allocation2] sm:$0xff]
    %v44 = vld [vmem:[#allocation2 + $0x8] sm:$0xff]
    %v45 = vld [vmem:[#allocation5] sm:$0xff]
    %v46 = vld [vmem:[#allocation5 + $0x8] sm:$0xff]
    %v47 = vld [vmem:[#allocation5 + $0x10] sm:$0xff]
    %v48 = vld [vmem:[#allocation5 + $0x18] sm:$0xff]
    %v49 = vld [vmem:[#allocation5 + $0x20] sm:$0xff]
    %v50 = vld [vmem:[#allocation5 + $0x28] sm:$0xff]
    %v51 = vld [vmem:[#allocation5 + $0x30] sm:$0xff]
    %v52 = vld [vmem:[#allocation5 + $0x38] sm:$0xff]
    %v53 = vld [vmem:[#allocation5 + $0x40] sm:$0xff]
    %v54 = vld [vmem:[#allocation5 + $0x48] sm:$0xff]
    %v55 = vld [vmem:[#allocation5 + $0x50] sm:$0xff]
    %v56 = vld [vmem:[#allocation5 + $0x58] sm:$0xff]
    %v57 = vld [vmem:[%s2] sm:$0x1]
    %v59 = vlaneseq
    %v60 = vshrl.u32 %v59, 7
    %v61 = vsub.s32 0, %v60
    %v62 = vrot.slane %v57, %v61
    %vm64 = vcmask 785408
    %v66 = vsel %vm64, %v43, 0
    %v69 = vsel %vm64, %v44, 0
    %71 = vmatprep.subr.mxu0 0.0
    %72 = vmatpush1.msra.mxu0 0.0
    %73 = vmatprep.subr.mxu0 0.0
    %74 = vmatpush1.msra.mxu0 0.0
    %75 = vmatprep.subr.mxu0 0.0
    %76 = vmatpush1.msra.mxu0 0.0
    %77 = vmatprep.subr.mxu0 0.0
    %78 = vmatpush1.msra.mxu0 0.0
    %79 = vmatprep.subr.mxu0 0.0
    %80 = vmatpush1.msra.mxu0 %v56
    %81 = vmatprep.subr.mxu0 0.0
    %82 = vmatpush1.msra.mxu0 %v55
    %83 = vmatprep.subr.mxu0 0.0
    %84 = vmatpush1.msra.mxu0 %v54
    %85 = vmatprep.subr.mxu0 0.0
    %86 = vmatpush1.msra.mxu0 %v53
    %87 = vmatprep.subr.mxu0 0.0
    %88 = vmatpush1.msra.mxu0 %v52
    %89 = vmatprep.subr.mxu0 0.0
    %90 = vmatpush1.msra.mxu0 %v51
    %91 = vmatprep.subr.mxu0 0.0
    %92 = vmatpush1.msra.mxu0 %v50
    %93 = vmatprep.subr.mxu0 0.0
    %94 = vmatpush1.msra.mxu0 %v49
    %95 = vmatprep.subr.mxu0 0.0
    %96 = vmatpush1.msra.mxu0 %v48
    %97 = vmatprep.subr.mxu0 0.0
    %98 = vmatpush1.msra.mxu0 %v47
    %99 = vmatprep.subr.mxu0 0.0
    %100 = vmatpush1.msra.mxu0 %v46
    %101 = vmatprep.subr.mxu0 0.0
    %102 = vmatpush1.msra.mxu0 %v45
    %103 = vmatprep.subr.mxu0 0.0
    %104 = vmatpush2.msra.mxu0 0.0
    %105 = vmatprep.subr.mxu0 0.0
    %106 = vmatpush2.msra.mxu0 0.0
    %107 = vmatprep.subr.mxu0 0.0
    %108 = vmatpush2.msra.mxu0 0.0
    %109 = vmatprep.subr.mxu0 0.0
    %110 = vmatpush2.msra.mxu0 0.0
    %111 = vmatprep.subr.mxu0 0.0
    %112 = vmatpush2.msra.mxu0 0.0
    %113 = vmatprep.subr.mxu0 0.0
    %114 = vmatpush2.msra.mxu0 0.0
    %115 = vmatprep.subr.mxu0 0.0
    %116 = vmatpush2.msra.mxu0 0.0
    %117 = vmatprep.subr.mxu0 0.0
    %118 = vmatpush2.msra.mxu0 0.0
    %119 = vmatprep.subr.mxu0 0.0
    %120 = vmatpush2.msra.mxu0 0.0
    %121 = vmatprep.subr.mxu0 0.0
    %122 = vmatpush2.msra.mxu0 0.0
    %123 = vmatprep.subr.mxu0 0.0
    %124 = vmatpush2.msra.mxu0 0.0
    %125 = vmatprep.subr.mxu0 0.0
    %126 = vmatpush2.msra.mxu0 0.0
    %127 = vmatprep.subr.mxu0 0.0
    %128 = vmatpush2.msra.mxu0 0.0
    %129 = vmatprep.subr.mxu0 0.0
    %130 = vmatpush2.msra.mxu0 0.0
    %131 = vmatprep.subr.mxu0 0.0
    %132 = vmatpush2.msra.mxu0 0.0
    %133 = vmatprep.subr.mxu0 0.0
    %134 = vmatpush2.msra.mxu0 0.0
    %135 = vmatprep.mubr.f32.mxu0 0.0
    %136 = vmatmul.mubr.f32.gmra.mxu0 %v66
    %v137 = vpop.f32.mrf.mxu0
    %v138 = vadd.f32 %v62, %v137
    %v139 = vpop.f32.mrf.mxu0
    %140 = vmatprep.mubr.f32.mxu0 0.0
    %141 = vmatmul.mubr.f32.gmra.mxu0 %v69
    %v142 = vpop.f32.mrf.mxu0
    %v143 = vadd.f32 %v62, %v142
    %v144 = vpop.f32.mrf.mxu0
    %145 = vdwg.mxu0
    %v146 = vxor.u32 %v138, 2147483648
    %v147 = vxor.u32 %v143, 2147483648
    %v148 = vmul.f32 %v146, 1.442695
    %v149 = vpow.pop %v148
    %v150 = vmul.f32 %v147, 1.442695
    %v151 = vpow.pop %v150
    %v152 = vadd.f32 %v149, 1.0
    %v153 = vadd.f32 %v151, 1.0
    %v154 = vrcp.pop %v152
    %v155 = vmul.f32 1.0, %v154
    %v156 = vrcp.pop %v153
    %v157 = vmul.f32 1.0, %v156
    %160 = vrot.lane.b32.xlu0 %v138, 32
    %v161 = vpop.permute.xlu0 %160
    %162 = vrot.lane.b32.xlu0 %v143, 32
    %v163 = vpop.permute.xlu0 %162
    %v166 = vmul.f32 %v155, %v161
    %v167 = vmul.f32 %v157, %v163
    %170 = vrot.lane.b32.xlu0 %v166, 64
    %v171 = vpop.permute.xlu0 %170
    %172 = vrot.lane.b32.xlu0 %v167, 64
    %v173 = vpop.permute.xlu0 %172
    %v176 = vadd.f32 %v138, %v171
    %v177 = vadd.f32 %v143, %v173
    %v178 = vtanh.pop %v176
    %v179 = vtanh.pop %v177
    %v180 = vsub.f32 1.0, %v155
    %v181 = vsub.f32 1.0, %v157
    %184 = vrot.lane.b32.xlu0 %v178, 96
    %v185 = vpop.permute.xlu0 %184
    %186 = vrot.lane.b32.xlu0 %v179, 96
    %v187 = vpop.permute.xlu0 %186
    %v190 = vmul.f32 %v180, %v185
    %v191 = vmul.f32 %v181, %v187
    %192 = vrot.lane.b32.xlu0 %v43, 96
    %v193 = vpop.permute.xlu0 %192
    %194 = vrot.lane.b32.xlu0 %v44, 96
    %v195 = vpop.permute.xlu0 %194
    %v198 = vmul.f32 %v155, %v193
    %v199 = vmul.f32 %v157, %v195
    %v200 = vadd.f32 %v190, %v198
    %v201 = vadd.f32 %v191, %v199
    %204 = vrot.lane.b32.xlu0 %v200, 96
    %v205 = vpop.permute.xlu0 %204
    %206 = vrot.lane.b32.xlu0 %v201, 96
    %v207 = vpop.permute.xlu0 %206
    %vm210 = vcmask 261120
    %211 = vst.msk [vmem:[#allocation7] sm:$0xff] %vm210, %v205
    %212 = vst.msk [vmem:[#allocation7 + $0x8] sm:$0xff] %vm210, %v207
    // Predicated region
    $region22: #{tpu_custom_call.1} parent=1 // pred_check
      _
    $region23: #{tpu_custom_call.1} parent=1 // pred_check_branch
      %214 = sbr.rel (0) target = $region25
    $region24: #{tpu_custom_call.1} parent=1 // pred_region
      %s216 = ssub.s32 256, 256
      %217 = vsyncadd [#allocation4], %s216
      %s218 = sshll.u32 [#allocation7], 4
      %s219 = int_to_ptr.vmem [resolvable:$true] %s218
      %224 = dma.vmem_to_hbm [thread:$0]  %s219, 256, %s3, [#allocation4], 128, 128, 8
    $region25: #{tpu_custom_call.1} parent=1 // pred_fallthru
      _
    // Predicated region
    $region26: #{tpu_custom_call.1} parent=1 // pred_check
      _
    $region27: #{tpu_custom_call.1} parent=1 // pred_check_branch
      %226 = sbr.rel (0) target = $region29
    $region28: #{tpu_custom_call.1} parent=1 // pred_region
      %227 = dma.done [#allocation4], 256
    $region29: #{tpu_custom_call.1} parent=1 // pred_fallthru
      _
    %228 = vsyncpa [#allocation3], 1
    %229 = vsyncpa [#allocation6], 1
    %230 = vsyncpa [#allocation4], 1

</llo_original>
